<compile_context>
chip_gen: v5e
topology: v5e:2x2
jax: 0.10.0
libtpu: 0.0.40
codegen_flags: <defaults>
</compile_context>

<pallas_src>
import functools

import jax
import jax.numpy as jnp
from jax.experimental import pallas as pl
from jax.experimental.pallas import tpu as pltpu


def _round_up(a, m):
    return (a + m - 1) // m * m


def _num_tensorcores_per_chip():
    """Best-effort detection: v7x has 2 TensorCores per chip, v5e/v6e have 1."""
    try:
        kind = jax.devices()[0].device_kind.lower()
        if "v7" in kind:
            return 2
    except Exception:
        pass
    return 1


def _pick_tn(n_pad, prefer_split):
    """Lane-dense N tile. Full-N on 1-TC chips; 2-way split on 2-TC chips."""
    if prefer_split and n_pad >= 256 and n_pad % 128 == 0:
        return 128
    if n_pad <= 512:
        return n_pad
    if n_pad % 256 == 0:
        return 256
    return 128


# ----------------------------------------------------------------------------
# Kernels
# ----------------------------------------------------------------------------
def _matmul_bias_fullk_kernel(x_ref, w_ref, b_ref, o_ref):
    """Single-K-tile GEMM + bias: no accumulator scratch, no phases."""
    acc = jnp.dot(x_ref[...], w_ref[...], preferred_element_type=jnp.float32)
    o_ref[...] = (acc + b_ref[...].astype(jnp.float32)).astype(o_ref.dtype)


def _matmul_bias_ksplit_kernel(x_ref, w_ref, b_ref, o_ref, acc_ref):
    """K-split GEMM with f32 VMEM accumulator (fallback for very large K)."""
    k = pl.program_id(2)

    @pl.when(k == 0)
    def _():
        acc_ref[...] = jnp.zeros_like(acc_ref)

    acc_ref[...] += jnp.dot(x_ref[...], w_ref[...],
                            preferred_element_type=jnp.float32)

    @pl.when(k == pl.num_programs(2) - 1)
    def _():
        o_ref[...] = (acc_ref[...] + b_ref[...].astype(jnp.float32)
                      ).astype(o_ref.dtype)


# ----------------------------------------------------------------------------
# GEMM wrapper
# ----------------------------------------------------------------------------
def _matmul_bias(x, w, b, *, out_dtype=jnp.float32, vmem_budget=12 * 1024 * 1024):
    """y = x @ w + b  with x:(M,K), w:(K,N), b:(1,N) -> (M,N), f32 accumulate."""
    M, K = x.shape
    Kw, N = w.shape
    assert Kw == K

    tm = min(256, _round_up(M, 8))
    n_pad = _round_up(N, 128)
    tn = _pick_tn(n_pad, prefer_split=_num_tensorcores_per_chip() >= 2)
    tn = min(tn, n_pad)

    # Full-K tile if the double-buffered tiles fit the VMEM budget, else halve.
    def tile_bytes(tk_):
        return (2 * (tm * tk_ * x.dtype.itemsize + tk_ * tn * w.dtype.itemsize)
                + 2 * tm * tn * 4)

    tk = _round_up(K, 128)
    while tile_bytes(tk) > vmem_budget and tk > 512:
        tk = _round_up(max(tk // 2, 512), 128)

    Mp = _round_up(M, tm)
    Np = _round_up(n_pad, tn)
    Kp = _round_up(K, tk)

    if (Mp, Kp) != (M, K):
        x = jnp.pad(x, ((0, Mp - M), (0, Kp - K)))
    if (Kp, Np) != (K, N):
        w = jnp.pad(w, ((0, Kp - K), (0, Np - N)))
    if Np != N:
        b = jnp.pad(b, ((0, 0), (0, Np - N)))

    n_m, n_n, n_k = Mp // tm, Np // tn, Kp // tk

    if n_k == 1:
        # Collapsed-K fast path: 2-D grid, no scratch, no predicated phases.
        out = pl.pallas_call(
            _matmul_bias_fullk_kernel,
            out_shape=jax.ShapeDtypeStruct((Mp, Np), out_dtype),
            grid_spec=pltpu.PrefetchScalarGridSpec(
                num_scalar_prefetch=0,
                grid=(n_m, n_n),
                in_specs=[
                    pl.BlockSpec((tm, Kp), lambda i, j: (i, 0)),   # x slab
                    pl.BlockSpec((Kp, tn), lambda i, j: (0, j)),   # W_t tile
                    pl.BlockSpec((1, tn), lambda i, j: (0, j)),    # bias row
                ],
                out_specs=pl.BlockSpec((tm, tn), lambda i, j: (i, j)),
            ),
            compiler_params=pltpu.CompilerParams(
                dimension_semantics=("parallel", "parallel")),
        )(x, w, b)
    else:
        out = pl.pallas_call(
            _matmul_bias_ksplit_kernel,
            out_shape=jax.ShapeDtypeStruct((Mp, Np), out_dtype),
            grid_spec=pltpu.PrefetchScalarGridSpec(
                num_scalar_prefetch=0,
                grid=(n_m, n_n, n_k),
                in_specs=[
                    pl.BlockSpec((tm, tk), lambda i, j, k: (i, k)),
                    pl.BlockSpec((tk, tn), lambda i, j, k: (k, j)),
                    pl.BlockSpec((1, tn), lambda i, j, k: (0, j)),
                ],
                out_specs=pl.BlockSpec((tm, tn), lambda i, j, k: (i, j)),
                scratch_shapes=[pltpu.VMEM((tm, tn), jnp.float32)],
            ),
            compiler_params=pltpu.CompilerParams(
                dimension_semantics=("parallel", "parallel", "arbitrary")),
        )(x, w, b)

    return out[:M, :N]


# ----------------------------------------------------------------------------
# PatchEmbed forward
# ----------------------------------------------------------------------------
def prepare_weights(weight, bias, compute_dtype=jnp.bfloat16):
    """One-time (init) layout + dtype prep.

    weight: (embed_dim, ipt_size, patch_size)  -- nn.Conv1d weight
    bias:   (embed_dim,)
    Returns (w_t, b) with w_t: (ipt_size*patch_size, embed_dim) in compute_dtype.
    """
    E, c_in, K = weight.shape
    w_t = weight.reshape(E, c_in * K).T.astype(compute_dtype)
    return jnp.asarray(w_t), bias.astype(jnp.float32).reshape(1, E)


def patch_embed_forward(x, w_t, bias, *, c_in, kernel_size, stride=1):
    """PatchEmbed.forward.

    x:    (B, ipt_size, patch_size)  -- the PyTorch (B_n_s, s_l, d) input
    w_t:  (ipt_size*patch_size, embed_dim), pre-transposed/pre-cast at init
    bias: (1, embed_dim), f32
    Returns (B, embed_dim) when the conv yields one output position (squeeze(2)),
    else (B, embed_dim, L_out).
    """
    B, cin, L = x.shape
    assert cin == c_in
    CK, E = w_t.shape
    K = kernel_size
    L_out = (L - K) // stride + 1

    if L_out == 1:
        # Fast path: single output position only reads the first K columns;
        # a contiguous reshape (no copy) replaces the im2col stack.
        x_col = x[:, :, :K].reshape(B, c_in * K)
    else:
        # TODO(synk): for large L_out, feed windows through the GEMM grid with a
        # row-tile axis instead of materializing overlapping im2col slabs in HBM.
        cols = [x[:, :, l * stride:l * stride + K].reshape(B, c_in * K)
                for l in range(L_out)]
        x_col = jnp.stack(cols, axis=1).reshape(B * L_out, c_in * K)

    x_col = x_col.astype(w_t.dtype)                 # stream bf16, accumulate f32
    y = _matmul_bias(x_col, w_t, bias, out_dtype=x.dtype)   # (B*L_out, E)

    if L_out == 1:
        return y.reshape(B, E)                      # torch .squeeze(2)
    return y.reshape(B, L_out, E).transpose(0, 2, 1)


def init_params(key, ipt_size, patch_size, embed_dim):
    kw, kb = jax.random.split(key)
    fan_in = ipt_size * patch_size
    bound = fan_in ** -0.5  # nn.Conv1d default init range
    weight = jax.random.uniform(kw, (embed_dim, ipt_size, patch_size),
                                jnp.float32, -bound, bound)
    bias = jax.random.uniform(kb, (embed_dim,), jnp.float32, -bound, bound)
    return weight, bias


if __name__ == "__main__":
    # Small shapes consistent with the module (defaults are 256/20/1/256).
    B, ipt_size, patch_size, embed_dim, stride = 8, 64, 20, 128, 1

    key = jax.random.PRNGKey(0)
    kx, kp = jax.random.split(key)
    x = jax.random.normal(kx, (B, ipt_size, patch_size), jnp.float32)
    weight, bias = init_params(kp, ipt_size, patch_size, embed_dim)

    # One-time init-side layout/dtype prep (no per-call transpose).
    w_t, b_row = prepare_weights(weight, bias, compute_dtype=jnp.bfloat16)

    fwd = jax.jit(functools.partial(
        patch_embed_forward, c_in=ipt_size, kernel_size=patch_size, stride=stride))
    out = fwd(x, w_t, b_row)
    jax.block_until_ready(out)
    assert out.shape == (B, embed_dim), out.shape

    # Reference: Conv1d with a single output position == flattened dot product,
    # computed on the same bf16-rounded operands with f32 accumulation.
    x_r = x.astype(jnp.bfloat16).astype(jnp.float32)
    w_r = weight.astype(jnp.bfloat16).astype(jnp.float32)
    ref = jnp.einsum("bck,eck->be", x_r, w_r) + bias[None, :]
    assert jnp.allclose(out, ref, rtol=2e-2, atol=2e-2)

    print("KERNEL_OK")
</pallas_src>

<mosaic_0001>
module attributes {stable_mosaic.version = 11 : i64} {
  func.func @_matmul_bias_fullk_kernel(%arg0: i32, %arg1: i32, %arg2: memref<8x1280xbf16, #tpu.memory_space<vmem>>, %arg3: memref<1280x128xbf16, #tpu.memory_space<vmem>>, %arg4: memref<1x128xf32, #tpu.memory_space<vmem>>, %arg5: memref<8x128xf32, #tpu.memory_space<vmem>>) attributes {dimension_semantics = [#tpu.dimension_semantics<parallel>, #tpu.dimension_semantics<parallel>], iteration_bounds = array<i64: 1, 1>, scalar_prefetch = 0 : i64, scratch_operands = 0 : i64, tpu.core_type = #tpu.core_type<tc>, window_params = [{transform_indices = @transform_0, window_bounds = array<i64: 8, 1280>}, {transform_indices = @transform_1, window_bounds = array<i64: 1280, 128>}, {transform_indices = @transform_2, window_bounds = array<i64: 1, 128>}, {transform_indices = @transform_3, window_bounds = array<i64: 8, 128>}]} {
    %c0 = arith.constant 0 : index
    %c0_0 = arith.constant 0 : index
    %0 = vector.load %arg2[%c0, %c0_0] : memref<8x1280xbf16, #tpu.memory_space<vmem>>, vector<8x1280xbf16>
    %c0_1 = arith.constant 0 : index
    %c0_2 = arith.constant 0 : index
    %1 = vector.load %arg3[%c0_1, %c0_2] : memref<1280x128xbf16, #tpu.memory_space<vmem>>, vector<1280x128xbf16>
    %cst = arith.constant dense<0.000000e+00> : vector<8x128xf32>
    %2 = tpu.matmul %0, %1, %cst {dimension_numbers = #tpu.dot_dimension_numbers<[1], [0], [0], [1], [0, 0, 1, 1], [], []>} : vector<8x1280xbf16>, vector<1280x128xbf16>, vector<8x128xf32> -> vector<8x128xf32>
    %c0_3 = arith.constant 0 : index
    %c0_4 = arith.constant 0 : index
    %3 = vector.load %arg4[%c0_3, %c0_4] : memref<1x128xf32, #tpu.memory_space<vmem>>, vector<1x128xf32>
    %4 = vector.broadcast %3 : vector<1x128xf32> to vector<8x128xf32>
    %5 = arith.addf %2, %4 : vector<8x128xf32>
    %c0_5 = arith.constant 0 : index
    %c0_6 = arith.constant 0 : index
    %6 = vector.load %arg5[%c0_5, %c0_6] : memref<8x128xf32, #tpu.memory_space<vmem>>, vector<8x128xf32>
    tpu.vector_store %arg5[%c0_5, %c0_6], %5 {strides = array<i32>} : memref<8x128xf32, #tpu.memory_space<vmem>>, vector<8x128xf32>,
    return
  }
  func.func @transform_0(%arg0: i32, %arg1: i32) -> (i32, i32) {
    %c0_i32 = arith.constant 0 : i32
    %c0_i32_0 = arith.constant 0 : i32
    return %arg0, %c0_i32 : i32, i32
  }
  func.func @transform_1(%arg0: i32, %arg1: i32) -> (i32, i32) {
    %c0_i32 = arith.constant 0 : i32
    %c0_i32_0 = arith.constant 0 : i32
    return %c0_i32, %arg1 : i32, i32
  }
  func.func @transform_2(%arg0: i32, %arg1: i32) -> (i32, i32) {
    %c0_i32 = arith.constant 0 : i32
    %c0_i32_0 = arith.constant 0 : i32
    return %c0_i32, %arg1 : i32, i32
  }
  func.func @transform_3(%arg0: i32, %arg1: i32) -> (i32, i32) {
    %c0_i32 = arith.constant 0 : i32
    return %arg0, %arg1 : i32, i32
  }
}

</mosaic_0001>

<llo_original>
// kernel: patch_embed_forward.1
$region0: #{patch_embed_forward.1}
  #allocation0 [shape = 'u32[]', space=smem, size = 0x4, offset = 0x4, fixed_abs, tag = 'smem constant byte address 0x4 - core index']
  #allocation1 [shape = 'u32[72,128]{1,0:T(1,128)}', space=vmem, size = 0x9000, scoped, tag = 'internal scratch']
  %s0 = inlined_call_operand.vmem [shape: bf16[8,1280], index: 0, kind: input, shape index: {}]
  %s1 = inlined_call_operand.vmem [shape: bf16[1280,128], index: 1, kind: input, shape index: {}]
  %s2 = inlined_call_operand.vmem [shape: f32[1,128], index: 2, kind: input, shape index: {}]
  %s3 = inlined_call_operand.hbm [shape: f32[8,128], index: 3, kind: output, shape index: {}]
  %s4 = sld [smem:[#allocation0]]
  $region22: #{patch_embed_forward.1} parent=0
    _
  %s6 = ssub.s32 1, %s4
  %s7 = scalar_select 0, %s6, %s4
  $region1: #{patch_embed_forward.1} parent=0
    #allocation2 [shape = 'u8[4096]{0}', space=vmem, size = 0x1000, scoped, tag = 'output window, operand 0, single buffered']
    #allocation3 [shape = 's32[1]{0}', space=sflag, size = 0x4, scoped, tag = 'scoped memory for patch_embed_forward.1']
    %8 = vsyncpa [#allocation3], 0
    // Predicated region
    $region2: #{patch_embed_forward.1} parent=1 // pred_check
      _
    $region3: #{patch_embed_forward.1} parent=1 // pred_check_branch
      %10 = sbr.rel (0) target = $region5
    $region4: #{patch_embed_forward.1} parent=1 // pred_region
      _
    $region5: #{patch_embed_forward.1} parent=1 // pred_fallthru
      _
    // Predicated region
    $region6: #{patch_embed_forward.1} parent=1 // pred_check
      _
    $region7: #{patch_embed_forward.1} parent=1 // pred_check_branch
      %12 = sbr.rel (0) target = $region9
    $region8: #{patch_embed_forward.1} parent=1 // pred_region
      _
    $region9: #{patch_embed_forward.1} parent=1 // pred_fallthru
      _
    // Predicated region
    $region10: #{patch_embed_forward.1} parent=1 // pred_check
      _
    $region11: #{patch_embed_forward.1} parent=1 // pred_check_branch
      %14 = sbr.rel (0) target = $region13
    $region12: #{patch_embed_forward.1} parent=1 // pred_region
      _
    $region13: #{patch_embed_forward.1} parent=1 // pred_fallthru
      _
    %v15 = vld [vmem:[%s0] sm:$0xff]
    %v16 = vld [vmem:[%s0 + $0x8] sm:$0xff]
    %v17 = vld [vmem:[%s0 + $0x10] sm:$0xff]
    %v18 = vld [vmem:[%s0 + $0x18] sm:$0xff]
    %v19 = vld [vmem:[%s0 + $0x20] sm:$0xff]
    %v20 = vld [vmem:[%s1] sm:$0xf]
    %v21 = vld [vmem:[%s1 + $0x4] sm:$0xf]
    %v22 = vld [vmem:[%s1 + $0x8] sm:$0xf]
    %v23 = vld [vmem:[%s1 + $0xc] sm:$0xf]
    %v24 = vld [vmem:[%s1 + $0x10] sm:$0xf]
    %v25 = vld [vmem:[%s1 + $0x14] sm:$0xf]
    %v26 = vld [vmem:[%s1 + $0x18] sm:$0xf]
    %v27 = vld [vmem:[%s1 + $0x1c] sm:$0xf]
    %v28 = vld [vmem:[%s1 + $0x20] sm:$0xf]
    %v29 = vld [vmem:[%s1 + $0x24] sm:$0xf]
    %v30 = vld [vmem:[%s1 + $0x28] sm:$0xf]
    %v31 = vld [vmem:[%s1 + $0x2c] sm:$0xf]
    %v32 = vld [vmem:[%s1 + $0x30] sm:$0xf]
    %v33 = vld [vmem:[%s1 + $0x34] sm:$0xf]
    %v34 = vld [vmem:[%s1 + $0x38] sm:$0xf]
    %v35 = vld [vmem:[%s1 + $0x3c] sm:$0xf]
    %v36 = vld [vmem:[%s1 + $0x40] sm:$0xf]
    %v37 = vld [vmem:[%s1 + $0x44] sm:$0xf]
    %v38 = vld [vmem:[%s1 + $0x48] sm:$0xf]
    %v39 = vld [vmem:[%s1 + $0x4c] sm:$0xf]
    %v40 = vld [vmem:[%s1 + $0x50] sm:$0xf]
    %v41 = vld [vmem:[%s1 + $0x54] sm:$0xf]
    %v42 = vld [vmem:[%s1 + $0x58] sm:$0xf]
    %v43 = vld [vmem:[%s1 + $0x5c] sm:$0xf]
    %v44 = vld [vmem:[%s1 + $0x60] sm:$0xf]
    %v45 = vld [vmem:[%s1 + $0x64] sm:$0xf]
    %v46 = vld [vmem:[%s1 + $0x68] sm:$0xf]
    %v47 = vld [vmem:[%s1 + $0x6c] sm:$0xf]
    %v48 = vld [vmem:[%s1 + $0x70] sm:$0xf]
    %v49 = vld [vmem:[%s1 + $0x74] sm:$0xf]
    %v50 = vld [vmem:[%s1 + $0x78] sm:$0xf]
    %v51 = vld [vmem:[%s1 + $0x7c] sm:$0xf]
    %v52 = vld [vmem:[%s1 + $0x80] sm:$0xf]
    %v53 = vld [vmem:[%s1 + $0x84] sm:$0xf]
    %v54 = vld [vmem:[%s1 + $0x88] sm:$0xf]
    %v55 = vld [vmem:[%s1 + $0x8c] sm:$0xf]
    %v56 = vld [vmem:[%s1 + $0x90] sm:$0xf]
    %v57 = vld [vmem:[%s1 + $0x94] sm:$0xf]
    %v58 = vld [vmem:[%s1 + $0x98] sm:$0xf]
    %v59 = vld [vmem:[%s1 + $0x9c] sm:$0xf]
    %v60 = vld [vmem:[%s1 + $0xa0] sm:$0xf]
    %v61 = vld [vmem:[%s1 + $0xa4] sm:$0xf]
    %v62 = vld [vmem:[%s1 + $0xa8] sm:$0xf]
    %v63 = vld [vmem:[%s1 + $0xac] sm:$0xf]
    %v64 = vld [vmem:[%s1 + $0xb0] sm:$0xf]
    %v65 = vld [vmem:[%s1 + $0xb4] sm:$0xf]
    %v66 = vld [vmem:[%s1 + $0xb8] sm:$0xf]
    %v67 = vld [vmem:[%s1 + $0xbc] sm:$0xf]
    %v68 = vld [vmem:[%s1 + $0xc0] sm:$0xf]
    %v69 = vld [vmem:[%s1 + $0xc4] sm:$0xf]
    %v70 = vld [vmem:[%s1 + $0xc8] sm:$0xf]
    %v71 = vld [vmem:[%s1 + $0xcc] sm:$0xf]
    %v72 = vld [vmem:[%s1 + $0xd0] sm:$0xf]
    %v73 = vld [vmem:[%s1 + $0xd4] sm:$0xf]
    %v74 = vld [vmem:[%s1 + $0xd8] sm:$0xf]
    %v75 = vld [vmem:[%s1 + $0xdc] sm:$0xf]
    %v76 = vld [vmem:[%s1 + $0xe0] sm:$0xf]
    %v77 = vld [vmem:[%s1 + $0xe4] sm:$0xf]
    %v78 = vld [vmem:[%s1 + $0xe8] sm:$0xf]
    %v79 = vld [vmem:[%s1 + $0xec] sm:$0xf]
    %v80 = vld [vmem:[%s1 + $0xf0] sm:$0xf]
    %v81 = vld [vmem:[%s1 + $0xf4] sm:$0xf]
    %v82 = vld [vmem:[%s1 + $0xf8] sm:$0xf]
    %v83 = vld [vmem:[%s1 + $0xfc] sm:$0xf]
    %v84 = vld [vmem:[%s1 + $0x100] sm:$0xf]
    %v85 = vld [vmem:[%s1 + $0x104] sm:$0xf]
    %v86 = vld [vmem:[%s1 + $0x108] sm:$0xf]
    %v87 = vld [vmem:[%s1 + $0x10c] sm:$0xf]
    %v88 = vld [vmem:[%s1 + $0x110] sm:$0xf]
    %v89 = vld [vmem:[%s1 + $0x114] sm:$0xf]
    %v90 = vld [vmem:[%s1 + $0x118] sm:$0xf]
    %v91 = vld [vmem:[%s1 + $0x11c] sm:$0xf]
    %v92 = vld [vmem:[%s1 + $0x120] sm:$0xf]
    %v93 = vld [vmem:[%s1 + $0x124] sm:$0xf]
    %v94 = vld [vmem:[%s1 + $0x128] sm:$0xf]
    %v95 = vld [vmem:[%s1 + $0x12c] sm:$0xf]
    %v96 = vld [vmem:[%s1 + $0x130] sm:$0xf]
    %v97 = vld [vmem:[%s1 + $0x134] sm:$0xf]
    %v98 = vld [vmem:[%s1 + $0x138] sm:$0xf]
    %v99 = vld [vmem:[%s1 + $0x13c] sm:$0xf]
    %v100 = vld [vmem:[%s1 + $0x140] sm:$0xf]
    %v101 = vld [vmem:[%s1 + $0x144] sm:$0xf]
    %v102 = vld [vmem:[%s1 + $0x148] sm:$0xf]
    %v103 = vld [vmem:[%s1 + $0x14c] sm:$0xf]
    %v104 = vld [vmem:[%s1 + $0x150] sm:$0xf]
    %v105 = vld [vmem:[%s1 + $0x154] sm:$0xf]
    %v106 = vld [vmem:[%s1 + $0x158] sm:$0xf]
    %v107 = vld [vmem:[%s1 + $0x15c] sm:$0xf]
    %v108 = vld [vmem:[%s1 + $0x160] sm:$0xf]
    %v109 = vld [vmem:[%s1 + $0x164] sm:$0xf]
    %v110 = vld [vmem:[%s1 + $0x168] sm:$0xf]
    %v111 = vld [vmem:[%s1 + $0x16c] sm:$0xf]
    %v112 = vld [vmem:[%s1 + $0x170] sm:$0xf]
    %v113 = vld [vmem:[%s1 + $0x174] sm:$0xf]
    %v114 = vld [vmem:[%s1 + $0x178] sm:$0xf]
    %v115 = vld [vmem:[%s1 + $0x17c] sm:$0xf]
    %v116 = vld [vmem:[%s1 + $0x180] sm:$0xf]
    %v117 = vld [vmem:[%s1 + $0x184] sm:$0xf]
    %v118 = vld [vmem:[%s1 + $0x188] sm:$0xf]
    %v119 = vld [vmem:[%s1 + $0x18c] sm:$0xf]
    %v120 = vld [vmem:[%s1 + $0x190] sm:$0xf]
    %v121 = vld [vmem:[%s1 + $0x194] sm:$0xf]
    %v122 = vld [vmem:[%s1 + $0x198] sm:$0xf]
    %v123 = vld [vmem:[%s1 + $0x19c] sm:$0xf]
    %v124 = vld [vmem:[%s1 + $0x1a0] sm:$0xf]
    %v125 = vld [vmem:[%s1 + $0x1a4] sm:$0xf]
    %v126 = vld [vmem:[%s1 + $0x1a8] sm:$0xf]
    %v127 = vld [vmem:[%s1 + $0x1ac] sm:$0xf]
    %v128 = vld [vmem:[%s1 + $0x1b0] sm:$0xf]
    %v129 = vld [vmem:[%s1 + $0x1b4] sm:$0xf]
    %v130 = vld [vmem:[%s1 + $0x1b8] sm:$0xf]
    %v131 = vld [vmem:[%s1 + $0x1bc] sm:$0xf]
    %v132 = vld [vmem:[%s1 + $0x1c0] sm:$0xf]
    %v133 = vld [vmem:[%s1 + $0x1c4] sm:$0xf]
    %v134 = vld [vmem:[%s1 + $0x1c8] sm:$0xf]
    %v135 = vld [vmem:[%s1 + $0x1cc] sm:$0xf]
    %v136 = vld [vmem:[%s1 + $0x1d0] sm:$0xf]
    %v137 = vld [vmem:[%s1 + $0x1d4] sm:$0xf]
    %v138 = vld [vmem:[%s1 + $0x1d8] sm:$0xf]
    %v139 = vld [vmem:[%s1 + $0x1dc] sm:$0xf]
    %v140 = vld [vmem:[%s1 + $0x1e0] sm:$0xf]
    %v141 = vld [vmem:[%s1 + $0x1e4] sm:$0xf]
    %v142 = vld [vmem:[%s1 + $0x1e8] sm:$0xf]
    %v143 = vld [vmem:[%s1 + $0x1ec] sm:$0xf]
    %v144 = vld [vmem:[%s1 + $0x1f0] sm:$0xf]
    %v145 = vld [vmem:[%s1 + $0x1f4] sm:$0xf]
    %v146 = vld [vmem:[%s1 + $0x1f8] sm:$0xf]
    %v147 = vld [vmem:[%s1 + $0x1fc] sm:$0xf]
    %v148 = vld [vmem:[%s1 + $0x200] sm:$0xf]
    %v149 = vld [vmem:[%s1 + $0x204] sm:$0xf]
    %v150 = vld [vmem:[%s1 + $0x208] sm:$0xf]
    %v151 = vld [vmem:[%s1 + $0x20c] sm:$0xf]
    %v152 = vld [vmem:[%s1 + $0x210] sm:$0xf]
    %v153 = vld [vmem:[%s1 + $0x214] sm:$0xf]
    %v154 = vld [vmem:[%s1 + $0x218] sm:$0xf]
    %v155 = vld [vmem:[%s1 + $0x21c] sm:$0xf]
    %v156 = vld [vmem:[%s1 + $0x220] sm:$0xf]
    %v157 = vld [vmem:[%s1 + $0x224] sm:$0xf]
    %v158 = vld [vmem:[%s1 + $0x228] sm:$0xf]
    %v159 = vld [vmem:[%s1 + $0x22c] sm:$0xf]
    %v160 = vld [vmem:[%s1 + $0x230] sm:$0xf]
    %v161 = vld [vmem:[%s1 + $0x234] sm:$0xf]
    %v162 = vld [vmem:[%s1 + $0x238] sm:$0xf]
    %v163 = vld [vmem:[%s1 + $0x23c] sm:$0xf]
    %v164 = vld [vmem:[%s1 + $0x240] sm:$0xf]
    %v165 = vld [vmem:[%s1 + $0x244] sm:$0xf]
    %v166 = vld [vmem:[%s1 + $0x248] sm:$0xf]
    %v167 = vld [vmem:[%s1 + $0x24c] sm:$0xf]
    %v168 = vld [vmem:[%s1 + $0x250] sm:$0xf]
    %v169 = vld [vmem:[%s1 + $0x254] sm:$0xf]
    %v170 = vld [vmem:[%s1 + $0x258] sm:$0xf]
    %v171 = vld [vmem:[%s1 + $0x25c] sm:$0xf]
    %v172 = vld [vmem:[%s1 + $0x260] sm:$0xf]
    %v173 = vld [vmem:[%s1 + $0x264] sm:$0xf]
    %v174 = vld [vmem:[%s1 + $0x268] sm:$0xf]
    %v175 = vld [vmem:[%s1 + $0x26c] sm:$0xf]
    %v176 = vld [vmem:[%s1 + $0x270] sm:$0xf]
    %v177 = vld [vmem:[%s1 + $0x274] sm:$0xf]
    %v178 = vld [vmem:[%s1 + $0x278] sm:$0xf]
    %v179 = vld [vmem:[%s1 + $0x27c] sm:$0xf]
    %v180 = vld [vmem:[%s2] sm:$0x1]
    %v182 = vperm.slane %v180, 0
    %v189 = vunpack.c.l.b16 %v15
    %v190 = vunpack.c.h.b16 %v15
    %v191 = vunpack.c.l.b16 %v16
    %v192 = vunpack.c.h.b16 %v16
    %v193 = vunpack.c.l.b16 %v17
    %v194 = vunpack.c.h.b16 %v17
    %v195 = vunpack.c.l.b16 %v18
    %v196 = vunpack.c.h.b16 %v18
    %v197 = vunpack.c.l.b16 %v19
    %v198 = vunpack.c.h.b16 %v19
    %v199 = vpack.c.b16 %v189, %v189
    %v200 = vpack.c.b16 %v190, %v190
    %v201 = vpack.c.b16 %v191, %v191
    %v202 = vpack.c.b16 %v192, %v192
    %v203 = vpack.c.b16 %v193, %v193
    %v204 = vpack.c.b16 %v194, %v194
    %v205 = vpack.c.b16 %v195, %v195
    %v206 = vpack.c.b16 %v196, %v196
    %v207 = vpack.c.b16 %v197, %v197
    %v208 = vpack.c.b16 %v198, %v198
    %v379 = vunpack.c.l.b16 %v20
    %v380 = vunpack.c.l.b16 %v21
    %v381 = vunpack.c.l.b16 %v22
    %v382 = vunpack.c.l.b16 %v23
    %v383 = vunpack.c.l.b16 %v24
    %v384 = vunpack.c.l.b16 %v25
    %v385 = vunpack.c.l.b16 %v26
    %v386 = vunpack.c.l.b16 %v27
    %v387 = vunpack.c.l.b16 %v28
    %v388 = vunpack.c.l.b16 %v29
    %v389 = vunpack.c.l.b16 %v30
    %v390 = vunpack.c.l.b16 %v31
    %v391 = vunpack.c.l.b16 %v32
    %v392 = vunpack.c.l.b16 %v33
    %v393 = vunpack.c.l.b16 %v34
    %v394 = vunpack.c.l.b16 %v35
    %v395 = vunpack.c.l.b16 %v36
    %v396 = vunpack.c.l.b16 %v37
    %v397 = vunpack.c.l.b16 %v38
    %v398 = vunpack.c.l.b16 %v39
    %v399 = vunpack.c.l.b16 %v40
    %v400 = vunpack.c.l.b16 %v41
    %v401 = vunpack.c.l.b16 %v42
    %v402 = vunpack.c.l.b16 %v43
    %v403 = vunpack.c.l.b16 %v44
    %v404 = vunpack.c.l.b16 %v45
    %v405 = vunpack.c.l.b16 %v46
    %v406 = vunpack.c.l.b16 %v47
    %v407 = vunpack.c.l.b16 %v48
    %v408 = vunpack.c.l.b16 %v49
    %v409 = vunpack.c.l.b16 %v50
    %v410 = vunpack.c.l.b16 %v51
    %v411 = vunpack.c.l.b16 %v52
    %v412 = vunpack.c.l.b16 %v53
    %v413 = vunpack.c.l.b16 %v54
    %v414 = vunpack.c.l.b16 %v55
    %v415 = vunpack.c.l.b16 %v56
    %v416 = vunpack.c.l.b16 %v57
    %v417 = vunpack.c.l.b16 %v58
    %v418 = vunpack.c.l.b16 %v59
    %v419 = vunpack.c.l.b16 %v60
    %v420 = vunpack.c.l.b16 %v61
    %v421 = vunpack.c.l.b16 %v62
    %v422 = vunpack.c.l.b16 %v63
    %v423 = vunpack.c.l.b16 %v64
    %v424 = vunpack.c.l.b16 %v65
    %v425 = vunpack.c.l.b16 %v66
    %v426 = vunpack.c.l.b16 %v67
    %v427 = vunpack.c.l.b16 %v68
    %v428 = vunpack.c.l.b16 %v69
    %v429 = vunpack.c.l.b16 %v70
    %v430 = vunpack.c.l.b16 %v71
    %v431 = vunpack.c.l.b16 %v72
    %v432 = vunpack.c.l.b16 %v73
    %v433 = vunpack.c.l.b16 %v74
    %v434 = vunpack.c.l.b16 %v75
    %v435 = vunpack.c.l.b16 %v76
    %v436 = vunpack.c.l.b16 %v77
    %v437 = vunpack.c.l.b16 %v78
    %v438 = vunpack.c.l.b16 %v79
    %v439 = vunpack.c.l.b16 %v80
    %v440 = vunpack.c.l.b16 %v81
    %v441 = vunpack.c.l.b16 %v82
    %v442 = vunpack.c.l.b16 %v83
    %v443 = vunpack.c.l.b16 %v84
    %v444 = vunpack.c.l.b16 %v85
    %v445 = vunpack.c.l.b16 %v86
    %v446 = vunpack.c.l.b16 %v87
    %v447 = vunpack.c.l.b16 %v88
    %v448 = vunpack.c.l.b16 %v89
    %v449 = vunpack.c.l.b16 %v90
    %v450 = vunpack.c.l.b16 %v91
    %v451 = vunpack.c.l.b16 %v92
    %v452 = vunpack.c.l.b16 %v93
    %v453 = vunpack.c.l.b16 %v94
    %v454 = vunpack.c.l.b16 %v95
    %v455 = vunpack.c.l.b16 %v96
    %v456 = vunpack.c.l.b16 %v97
    %v457 = vunpack.c.l.b16 %v98
    %v458 = vunpack.c.l.b16 %v99
    %v459 = vunpack.c.l.b16 %v100
    %v460 = vunpack.c.l.b16 %v101
    %v461 = vunpack.c.l.b16 %v102
    %v462 = vunpack.c.l.b16 %v103
    %v463 = vunpack.c.l.b16 %v104
    %v464 = vunpack.c.l.b16 %v105
    %v465 = vunpack.c.l.b16 %v106
    %v466 = vunpack.c.l.b16 %v107
    %v467 = vunpack.c.l.b16 %v108
    %v468 = vunpack.c.l.b16 %v109
    %v469 = vunpack.c.l.b16 %v110
    %v470 = vunpack.c.l.b16 %v111
    %v471 = vunpack.c.l.b16 %v112
    %v472 = vunpack.c.l.b16 %v113
    %v473 = vunpack.c.l.b16 %v114
    %v474 = vunpack.c.l.b16 %v115
    %v475 = vunpack.c.l.b16 %v116
    %v476 = vunpack.c.l.b16 %v117
    %v477 = vunpack.c.l.b16 %v118
    %v478 = vunpack.c.l.b16 %v119
    %v479 = vunpack.c.l.b16 %v120
    %v480 = vunpack.c.l.b16 %v121
    %v481 = vunpack.c.l.b16 %v122
    %v482 = vunpack.c.l.b16 %v123
    %v483 = vunpack.c.l.b16 %v124
    %v484 = vunpack.c.l.b16 %v125
    %v485 = vunpack.c.l.b16 %v126
    %v486 = vunpack.c.l.b16 %v127
    %v487 = vunpack.c.l.b16 %v128
    %v488 = vunpack.c.l.b16 %v129
    %v489 = vunpack.c.l.b16 %v130
    %v490 = vunpack.c.l.b16 %v131
    %v491 = vunpack.c.l.b16 %v132
    %v492 = vunpack.c.l.b16 %v133
    %v493 = vunpack.c.l.b16 %v134
    %v494 = vunpack.c.l.b16 %v135
    %v495 = vunpack.c.l.b16 %v136
    %v496 = vunpack.c.l.b16 %v137
    %v497 = vunpack.c.l.b16 %v138
    %v498 = vunpack.c.l.b16 %v139
    %v499 = vunpack.c.l.b16 %v140
    %v500 = vunpack.c.l.b16 %v141
    %v501 = vunpack.c.l.b16 %v142
    %v502 = vunpack.c.l.b16 %v143
    %v503 = vunpack.c.l.b16 %v144
    %v504 = vunpack.c.l.b16 %v145
    %v505 = vunpack.c.l.b16 %v146
    %v506 = vunpack.c.l.b16 %v147
    %v507 = vunpack.c.l.b16 %v148
    %v508 = vunpack.c.l.b16 %v149
    %v509 = vunpack.c.l.b16 %v150
    %v510 = vunpack.c.l.b16 %v151
    %v511 = vunpack.c.l.b16 %v152
    %v512 = vunpack.c.l.b16 %v153
    %v513 = vunpack.c.l.b16 %v154
    %v514 = vunpack.c.l.b16 %v155
    %v515 = vunpack.c.l.b16 %v156
    %v516 = vunpack.c.l.b16 %v157
    %v517 = vunpack.c.l.b16 %v158
    %v518 = vunpack.c.l.b16 %v159
    %v519 = vunpack.c.l.b16 %v160
    %v520 = vunpack.c.l.b16 %v161
    %v521 = vunpack.c.l.b16 %v162
    %v522 = vunpack.c.l.b16 %v163
    %v523 = vunpack.c.l.b16 %v164
    %v524 = vunpack.c.l.b16 %v165
    %v525 = vunpack.c.l.b16 %v166
    %v526 = vunpack.c.l.b16 %v167
    %v527 = vunpack.c.l.b16 %v168
    %v528 = vunpack.c.l.b16 %v169
    %v529 = vunpack.c.l.b16 %v170
    %v530 = vunpack.c.l.b16 %v171
    %v531 = vunpack.c.l.b16 %v172
    %v532 = vunpack.c.l.b16 %v173
    %v533 = vunpack.c.l.b16 %v174
    %v534 = vunpack.c.l.b16 %v175
    %v535 = vunpack.c.l.b16 %v176
    %v536 = vunpack.c.l.b16 %v177
    %v537 = vunpack.c.l.b16 %v178
    %v538 = vunpack.c.l.b16 %v179
    %v539 = vpack.c.b16 %v380, %v379
    %v540 = vpack.c.b16 %v382, %v381
    %v541 = vpack.c.b16 %v384, %v383
    %v542 = vpack.c.b16 %v386, %v385
    %v543 = vpack.c.b16 %v388, %v387
    %v544 = vpack.c.b16 %v390, %v389
    %v545 = vpack.c.b16 %v392, %v391
    %v546 = vpack.c.b16 %v394, %v393
    %v547 = vpack.c.b16 %v396, %v395
    %v548 = vpack.c.b16 %v398, %v397
    %v549 = vpack.c.b16 %v400, %v399
    %v550 = vpack.c.b16 %v402, %v401
    %v551 = vpack.c.b16 %v404, %v403
    %v552 = vpack.c.b16 %v406, %v405
    %v553 = vpack.c.b16 %v408, %v407
    %v554 = vpack.c.b16 %v410, %v409
    %v555 = vpack.c.b16 %v412, %v411
    %v556 = vpack.c.b16 %v414, %v413
    %v557 = vpack.c.b16 %v416, %v415
    %v558 = vpack.c.b16 %v418, %v417
    %v559 = vpack.c.b16 %v420, %v419
    %v560 = vpack.c.b16 %v422, %v421
    %v561 = vpack.c.b16 %v424, %v423
    %v562 = vpack.c.b16 %v426, %v425
    %v563 = vpack.c.b16 %v428, %v427
    %v564 = vpack.c.b16 %v430, %v429
    %v565 = vpack.c.b16 %v432, %v431
    %v566 = vpack.c.b16 %v434, %v433
    %v567 = vpack.c.b16 %v436, %v435
    %v568 = vpack.c.b16 %v438, %v437
    %v569 = vpack.c.b16 %v440, %v439
    %v570 = vpack.c.b16 %v442, %v441
    %v571 = vpack.c.b16 %v444, %v443
    %v572 = vpack.c.b16 %v446, %v445
    %v573 = vpack.c.b16 %v448, %v447
    %v574 = vpack.c.b16 %v450, %v449
    %v575 = vpack.c.b16 %v452, %v451
    %v576 = vpack.c.b16 %v454, %v453
    %v577 = vpack.c.b16 %v456, %v455
    %v578 = vpack.c.b16 %v458, %v457
    %v579 = vpack.c.b16 %v460, %v459
    %v580 = vpack.c.b16 %v462, %v461
    %v581 = vpack.c.b16 %v464, %v463
    %v582 = vpack.c.b16 %v466, %v465
    %v583 = vpack.c.b16 %v468, %v467
    %v584 = vpack.c.b16 %v470, %v469
    %v585 = vpack.c.b16 %v472, %v471
    %v586 = vpack.c.b16 %v474, %v473
    %v587 = vpack.c.b16 %v476, %v475
    %v588 = vpack.c.b16 %v478, %v477
    %v589 = vpack.c.b16 %v480, %v479
    %v590 = vpack.c.b16 %v482, %v481
    %v591 = vpack.c.b16 %v484, %v483
    %v592 = vpack.c.b16 %v486, %v485
    %v593 = vpack.c.b16 %v488, %v487
    %v594 = vpack.c.b16 %v490, %v489
    %v595 = vpack.c.b16 %v492, %v491
    %v596 = vpack.c.b16 %v494, %v493
    %v597 = vpack.c.b16 %v496, %v495
    %v598 = vpack.c.b16 %v498, %v497
    %v599 = vpack.c.b16 %v500, %v499
    %v600 = vpack.c.b16 %v502, %v501
    %v601 = vpack.c.b16 %v504, %v503
    %v602 = vpack.c.b16 %v506, %v505
    %v603 = vpack.c.b16 %v508, %v507
    %v604 = vpack.c.b16 %v510, %v509
    %v605 = vpack.c.b16 %v512, %v511
    %v606 = vpack.c.b16 %v514, %v513
    %v607 = vpack.c.b16 %v516, %v515
    %v608 = vpack.c.b16 %v518, %v517
    %v609 = vpack.c.b16 %v520, %v519
    %v610 = vpack.c.b16 %v522, %v521
    %v611 = vpack.c.b16 %v524, %v523
    %v612 = vpack.c.b16 %v526, %v525
    %v613 = vpack.c.b16 %v528, %v527
    %v614 = vpack.c.b16 %v530, %v529
    %v615 = vpack.c.b16 %v532, %v531
    %v616 = vpack.c.b16 %v534, %v533
    %v617 = vpack.c.b16 %v536, %v535
    %v618 = vpack.c.b16 %v538, %v537
    %699 = vmatpush.bf16.msra.mxu0 %v546
    %700 = vmatpush.bf16.msra.mxu0 %v545
    %701 = vmatpush.bf16.msra.mxu0 %v544
    %702 = vmatpush.bf16.msra.mxu0 %v543
    %703 = vmatpush.bf16.msra.mxu0 %v542
    %704 = vmatpush.bf16.msra.mxu0 %v541
    %705 = vmatpush.bf16.msra.mxu0 %v540
    %706 = vmatpush.bf16.msra.mxu0 %v539
    %707 = vmatmul.bf16.gmra.mxu0 %v199
    %v708 = vpop.f32.mrf.mxu0
    %v709 = vadd.f32 %v182, %v708
    %v710 = vpop.f32.mrf.mxu0
    %711 = vdwg.mxu0
    %712 = vmatpush.bf16.msra.mxu0 %v554
    %713 = vmatpush.bf16.msra.mxu0 %v553
    %714 = vmatpush.bf16.msra.mxu0 %v552
    %715 = vmatpush.bf16.msra.mxu0 %v551
    %716 = vmatpush.bf16.msra.mxu0 %v550
    %717 = vmatpush.bf16.msra.mxu0 %v549
    %718 = vmatpush.bf16.msra.mxu0 %v548
    %719 = vmatpush.bf16.msra.mxu0 %v547
    %720 = vmatmul.bf16.gmra.mxu0 %v200
    %v721 = vpop.f32.mrf.mxu0
    %v722 = vadd.f32 %v709, %v721
    %v723 = vpop.f32.mrf.mxu0
    %724 = vdwg.mxu0
    %725 = vmatpush.bf16.msra.mxu0 %v562
    %726 = vmatpush.bf16.msra.mxu0 %v561
    %727 = vmatpush.bf16.msra.mxu0 %v560
    %728 = vmatpush.bf16.msra.mxu0 %v559
    %729 = vmatpush.bf16.msra.mxu0 %v558
    %730 = vmatpush.bf16.msra.mxu0 %v557
    %731 = vmatpush.bf16.msra.mxu0 %v556
    %732 = vmatpush.bf16.msra.mxu0 %v555
    %733 = vmatmul.bf16.gmra.mxu0 %v201
    %v734 = vpop.f32.mrf.mxu0
    %v735 = vadd.f32 %v722, %v734
    %v736 = vpop.f32.mrf.mxu0
    %737 = vdwg.mxu0
    %738 = vmatpush.bf16.msra.mxu0 %v570
    %739 = vmatpush.bf16.msra.mxu0 %v569
    %740 = vmatpush.bf16.msra.mxu0 %v568
    %741 = vmatpush.bf16.msra.mxu0 %v567
    %742 = vmatpush.bf16.msra.mxu0 %v566
    %743 = vmatpush.bf16.msra.mxu0 %v565
    %744 = vmatpush.bf16.msra.mxu0 %v564
    %745 = vmatpush.bf16.msra.mxu0 %v563
    %746 = vmatmul.bf16.gmra.mxu0 %v202
    %v747 = vpop.f32.mrf.mxu0
    %v748 = vadd.f32 %v735, %v747
    %v749 = vpop.f32.mrf.mxu0
    %750 = vdwg.mxu0
    %751 = vmatpush.bf16.msra.mxu0 %v578
    %752 = vmatpush.bf16.msra.mxu0 %v577
    %753 = vmatpush.bf16.msra.mxu0 %v576
    %754 = vmatpush.bf16.msra.mxu0 %v575
    %755 = vmatpush.bf16.msra.mxu0 %v574
    %756 = vmatpush.bf16.msra.mxu0 %v573
    %757 = vmatpush.bf16.msra.mxu0 %v572
    %758 = vmatpush.bf16.msra.mxu0 %v571
    %759 = vmatmul.bf16.gmra.mxu0 %v203
    %v760 = vpop.f32.mrf.mxu0
    %v761 = vadd.f32 %v748, %v760
    %v762 = vpop.f32.mrf.mxu0
    %763 = vdwg.mxu0
    %764 = vmatpush.bf16.msra.mxu0 %v586
    %765 = vmatpush.bf16.msra.mxu0 %v585
    %766 = vmatpush.bf16.msra.mxu0 %v584
    %767 = vmatpush.bf16.msra.mxu0 %v583
    %768 = vmatpush.bf16.msra.mxu0 %v582
    %769 = vmatpush.bf16.msra.mxu0 %v581
    %770 = vmatpush.bf16.msra.mxu0 %v580
    %771 = vmatpush.bf16.msra.mxu0 %v579
    %772 = vmatmul.bf16.gmra.mxu0 %v204
    %v773 = vpop.f32.mrf.mxu0
    %v774 = vadd.f32 %v761, %v773
    %v775 = vpop.f32.mrf.mxu0
    %776 = vdwg.mxu0
    %777 = vmatpush.bf16.msra.mxu0 %v594
    %778 = vmatpush.bf16.msra.mxu0 %v593
    %779 = vmatpush.bf16.msra.mxu0 %v592
    %780 = vmatpush.bf16.msra.mxu0 %v591
    %781 = vmatpush.bf16.msra.mxu0 %v590
    %782 = vmatpush.bf16.msra.mxu0 %v589
    %783 = vmatpush.bf16.msra.mxu0 %v588
    %784 = vmatpush.bf16.msra.mxu0 %v587
    %785 = vmatmul.bf16.gmra.mxu0 %v205
    %v786 = vpop.f32.mrf.mxu0
    %v787 = vadd.f32 %v774, %v786
    %v788 = vpop.f32.mrf.mxu0
    %789 = vdwg.mxu0
    %790 = vmatpush.bf16.msra.mxu0 %v602
    %791 = vmatpush.bf16.msra.mxu0 %v601
    %792 = vmatpush.bf16.msra.mxu0 %v600
    %793 = vmatpush.bf16.msra.mxu0 %v599
    %794 = vmatpush.bf16.msra.mxu0 %v598
    %795 = vmatpush.bf16.msra.mxu0 %v597
    %796 = vmatpush.bf16.msra.mxu0 %v596
    %797 = vmatpush.bf16.msra.mxu0 %v595
    %798 = vmatmul.bf16.gmra.mxu0 %v206
    %v799 = vpop.f32.mrf.mxu0
    %v800 = vadd.f32 %v787, %v799
    %v801 = vpop.f32.mrf.mxu0
    %802 = vdwg.mxu0
    %803 = vmatpush.bf16.msra.mxu0 %v610
    %804 = vmatpush.bf16.msra.mxu0 %v609
    %805 = vmatpush.bf16.msra.mxu0 %v608
    %806 = vmatpush.bf16.msra.mxu0 %v607
    %807 = vmatpush.bf16.msra.mxu0 %v606
    %808 = vmatpush.bf16.msra.mxu0 %v605
    %809 = vmatpush.bf16.msra.mxu0 %v604
    %810 = vmatpush.bf16.msra.mxu0 %v603
    %811 = vmatmul.bf16.gmra.mxu0 %v207
    %v812 = vpop.f32.mrf.mxu0
    %v813 = vadd.f32 %v800, %v812
    %v814 = vpop.f32.mrf.mxu0
    %815 = vdwg.mxu0
    %816 = vmatpush.bf16.msra.mxu0 %v618
    %817 = vmatpush.bf16.msra.mxu0 %v617
    %818 = vmatpush.bf16.msra.mxu0 %v616
    %819 = vmatpush.bf16.msra.mxu0 %v615
    %820 = vmatpush.bf16.msra.mxu0 %v614
    %821 = vmatpush.bf16.msra.mxu0 %v613
    %822 = vmatpush.bf16.msra.mxu0 %v612
    %823 = vmatpush.bf16.msra.mxu0 %v611
    %824 = vmatmul.bf16.gmra.mxu0 %v208
    %v825 = vpop.f32.mrf.mxu0
    %v826 = vadd.f32 %v813, %v825
    %v827 = vpop.f32.mrf.mxu0
    %828 = vdwg.mxu0
    %829 = vst [vmem:[#allocation2] sm:$0xff] %v826
    // Predicated region
    $region14: #{patch_embed_forward.1} parent=1 // pred_check
      _
    $region15: #{patch_embed_forward.1} parent=1 // pred_check_branch
      %831 = sbr.rel (0) target = $region17
    $region16: #{patch_embed_forward.1} parent=1 // pred_region
      %833 = vsyncadd [#allocation3], 0
      %s835 = sshll.u32 [#allocation2], 4
      %s836 = int_to_ptr.vmem [resolvable:$true] %s835
      %s837 = sshll.u32 %s3, 4
      %s838 = int_to_ptr.hbm [resolvable:$true] %s837
      %840 = dma.vmem_to_hbm [thread:$0]  %s836, 128, %s838, [#allocation3]
    $region17: #{patch_embed_forward.1} parent=1 // pred_fallthru
      _
    // Predicated region
    $region18: #{patch_embed_forward.1} parent=1 // pred_check
      _
    $region19: #{patch_embed_forward.1} parent=1 // pred_check_branch
      %842 = sbr.rel (0) target = $region21
    $region20: #{patch_embed_forward.1} parent=1 // pred_region
      %844 = dma.done [#allocation3], 128
    $region21: #{patch_embed_forward.1} parent=1 // pred_fallthru
      _
    %845 = vsyncpa [#allocation3], 1

</llo_original>
